<compile_context>
chip_gen: v7x
topology: tpu7x:2x2x1
jax: 0.10.0
libtpu: 0.0.40
codegen_flags: <defaults>
</compile_context>

<pallas_src>
import jax
import jax.numpy as jnp
from jax.experimental import pallas as pl
from jax.experimental.pallas import tpu as pltpu


def _fused_kernel(x_ref, w1_ref, b1_ref, w2_ref, b2_ref, o_ref):
    # x_ref : (C, tn)    f32    (one batch element, tn points on the lane axis)
    # w1_ref: (Cres, C)  bf16   (BN1-folded conv1 weight)
    # b1_ref: (Cres, 1)  f32    (BN1-folded conv1 bias)
    # w2_ref: (C, Cres)  bf16   (BN2-folded conv2 weight)
    # b2_ref: (C, 1)     f32    (BN2-folded conv2 bias)
    # o_ref : (C, tn)    f32 or bf16
    x = x_ref[...]                                                     # f32
    h = jnp.dot(w1_ref[...], x.astype(jnp.bfloat16),                   # bf16 MXU
                preferred_element_type=jnp.float32)                    # (Cres, tn)
    h = jnp.maximum(h + b1_ref[...], 0.0)                              # BN1 + ReLU (f32)
    y = jnp.dot(w2_ref[...], h.astype(jnp.bfloat16),                   # bf16 MXU
                preferred_element_type=jnp.float32)                    # (C, tn)
    y = y + b2_ref[...] + x                                            # BN2 + exact f32 residual
    o_ref[...] = jnp.maximum(y, 0.0).astype(o_ref.dtype)               # final ReLU


def conv_bn_relu_res1d_inception(x, w1f, b1f, w2f, b2f, *, tn=1024,
                                 out_dtype=jnp.float32):
    """Fused forward.

    x   : (B, C, N) float32, NCW layout (as in PyTorch).
    w1f : (Cres, C), b1f: (Cres,)  -- conv1 weight/bias with BN1 folded in.
    w2f : (C, Cres), b2f: (C,)     -- conv2 weight/bias with BN2 folded in.
    tn  : tile along the point dimension (multiple of 128).
    out_dtype : jnp.float32 (default) or jnp.bfloat16 (halves write traffic).
    """
    B, C, N = x.shape
    Cres = w1f.shape[0]
    out_bytes = jnp.dtype(out_dtype).itemsize

    # Point tile: multiple of 128, no larger than round_up(N, 128), and
    # clamped so per-step VMEM buffers fit a ~24 MiB budget (safe on v7x's
    # 64 MiB physical / 32 MiB scoped default; trivially safe on v5e/v6e).
    tn = max(128, min(int(tn), ((N + 127) // 128) * 128))
    tn = (tn // 128) * 128

    def _vmem_need(t):
        return (2 * C * t * 4            # double-buffered f32 x tile
                + 2 * C * t * out_bytes  # double-buffered output tile
                + Cres * t * 4           # f32 intermediate h
                + 2 * C * Cres * 2       # resident bf16 weights
                + (C + Cres) * 4)        # resident f32 biases

    while tn > 128 and _vmem_need(tn) > (24 << 20):
        tn -= 128

    grid = (B, pl.cdiv(N, tn))           # ragged last block clipped by Pallas

    # Tiny parameter tensors: cheap one-time casts, VMEM-resident across grid.
    w1_lo = w1f.astype(jnp.bfloat16)
    w2_lo = w2f.astype(jnp.bfloat16)
    b1_2d = b1f.reshape(Cres, 1).astype(jnp.float32)
    b2_2d = b2f.reshape(C, 1).astype(jnp.float32)

    flops = 2 * B * N * C * Cres * 2     # two (C x Cres) matmuls per point
    bytes_accessed = (B * C * N * (4 + out_bytes)         # f32 read + out write
                      + 2 * C * Cres * 2 + (C + Cres) * 4)

    return pl.pallas_call(
        _fused_kernel,
        out_shape=jax.ShapeDtypeStruct((B, C, N), out_dtype),
        grid_spec=pl.GridSpec(
            grid=grid,
            in_specs=[
                pl.BlockSpec((None, C, tn), lambda b, j: (b, 0, j)),   # x tile (f32)
                pl.BlockSpec((Cres, C), lambda b, j: (0, 0)),          # W1 (folded)
                pl.BlockSpec((Cres, 1), lambda b, j: (0, 0)),          # b1 (folded)
                pl.BlockSpec((C, Cres), lambda b, j: (0, 0)),          # W2 (folded)
                pl.BlockSpec((C, 1), lambda b, j: (0, 0)),             # b2 (folded)
            ],
            out_specs=pl.BlockSpec((None, C, tn), lambda b, j: (b, 0, j)),
        ),
        compiler_params=pltpu.CompilerParams(
            dimension_semantics=("parallel", "parallel")),
        cost_estimate=pl.CostEstimate(
            flops=flops, transcendentals=0, bytes_accessed=bytes_accessed),
    )(x, w1_lo, b1_2d, w2_lo, b2_2d)


def fold_bn(w, b, gamma, beta, mean, var, eps=1e-5):
    """Fold inference-mode BatchNorm1d into the preceding 1x1 conv (general form)."""
    scale = gamma / jnp.sqrt(var + eps)
    w_f = w * scale[:, None]
    b_f = beta + (b - mean) * scale
    return w_f, b_f


def make_params(key, channel, res_expansion=1.0):
    """Deterministic synthetic conv + BatchNorm parameters."""
    channel_res = int(channel * res_expansion)
    ks = jax.random.split(key, 12)
    w1 = jax.random.normal(ks[0], (channel_res, channel), jnp.float32) * 0.1
    b1 = jax.random.normal(ks[1], (channel_res,), jnp.float32) * 0.1
    w2 = jax.random.normal(ks[2], (channel, channel_res), jnp.float32) * 0.1
    b2 = jax.random.normal(ks[3], (channel,), jnp.float32) * 0.1
    # Non-trivial BN statistics (exercises the general fold, not identity BN).
    g1 = 1.0 + 0.1 * jax.random.normal(ks[4], (channel_res,), jnp.float32)
    be1 = 0.1 * jax.random.normal(ks[5], (channel_res,), jnp.float32)
    m1 = 0.1 * jax.random.normal(ks[6], (channel_res,), jnp.float32)
    v1 = 1.0 + 0.2 * jax.random.uniform(ks[7], (channel_res,), jnp.float32)
    g2 = 1.0 + 0.1 * jax.random.normal(ks[8], (channel,), jnp.float32)
    be2 = 0.1 * jax.random.normal(ks[9], (channel,), jnp.float32)
    m2 = 0.1 * jax.random.normal(ks[10], (channel,), jnp.float32)
    v2 = 1.0 + 0.2 * jax.random.uniform(ks[11], (channel,), jnp.float32)
    return (w1, b1, g1, be1, m1, v1), (w2, b2, g2, be2, m2, v2)


def reference(x, p1, p2, eps=1e-5):
    """Pure-JAX f32 reference: conv1 -> BN1 -> relu -> conv2 -> BN2 -> +x -> relu."""
    w1, b1, g1, be1, m1, v1 = p1
    w2, b2, g2, be2, m2, v2 = p2
    xr = jnp.transpose(x, (0, 2, 1))                     # (B, N, C)
    h = xr @ w1.T + b1
    h = (h - m1) / jnp.sqrt(v1 + eps) * g1 + be1
    h = jnp.maximum(h, 0.0)
    y = h @ w2.T + b2
    y = (y - m2) / jnp.sqrt(v2 + eps) * g2 + be2
    out = jnp.maximum(y + xr, 0.0)
    return jnp.transpose(out, (0, 2, 1))


if __name__ == "__main__":
    # TODO(synk): inception1/inception2 are built in the module's __init__ but
    # never called by forward(), so they are intentionally not implemented.
    key = jax.random.PRNGKey(0)
    kx, kp = jax.random.split(key)

    B, C, N = 2, 16, 200          # N is deliberately not a tile multiple
    x = jax.random.normal(kx, (B, C, N), jnp.float32)

    p1, p2 = make_params(kp, C, res_expansion=1.0)
    w1f, b1f = fold_bn(*p1)
    w2f, b2f = fold_bn(*p2)

    ref = reference(x, p1, p2)

    # Default f32-output path (errors only from bf16 weights / intermediate).
    out = conv_bn_relu_res1d_inception(x, w1f, b1f, w2f, b2f, tn=1024)
    out = jax.block_until_ready(out)
    assert out.shape == (B, C, N)
    assert jnp.allclose(out, ref, atol=5e-2, rtol=5e-2), float(
        jnp.max(jnp.abs(out - ref)))

    # bf16-output path (halved write traffic; looser tolerance for the cast).
    out_bf = conv_bn_relu_res1d_inception(x, w1f, b1f, w2f, b2f, tn=1024,
                                          out_dtype=jnp.bfloat16)
    out_bf = jax.block_until_ready(out_bf)
    assert out_bf.shape == (B, C, N)
    assert jnp.allclose(out_bf.astype(jnp.float32), ref, atol=1e-1, rtol=1e-1), float(
        jnp.max(jnp.abs(out_bf.astype(jnp.float32) - ref)))

    print("KERNEL_OK")
</pallas_src>

<mosaic_0001>
module attributes {stable_mosaic.version = 11 : i64} {
  func.func @_fused_kernel(%arg0: i32, %arg1: i32, %arg2: memref<1x16x256xf32, #tpu.memory_space<vmem>>, %arg3: memref<16x16xbf16, #tpu.memory_space<vmem>>, %arg4: memref<16x1xf32, #tpu.memory_space<vmem>>, %arg5: memref<16x16xbf16, #tpu.memory_space<vmem>>, %arg6: memref<16x1xf32, #tpu.memory_space<vmem>>, %arg7: memref<1x16x256xf32, #tpu.memory_space<vmem>>) attributes {dimension_semantics = [#tpu.dimension_semantics<parallel>, #tpu.dimension_semantics<parallel>], iteration_bounds = array<i64: 2, 1>, scalar_prefetch = 0 : i64, scratch_operands = 0 : i64, tpu.core_type = #tpu.core_type<tc>, window_params = [{transform_indices = @transform_0, window_bounds = array<i64: 1, 16, 256>}, {pipeline_mode = #tpu.pipeline_mode<synchronous>, transform_indices = @transform_1, window_bounds = array<i64: 16, 16>}, {pipeline_mode = #tpu.pipeline_mode<synchronous>, transform_indices = @transform_2, window_bounds = array<i64: 16, 1>}, {pipeline_mode = #tpu.pipeline_mode<synchronous>, transform_indices = @transform_3, window_bounds = array<i64: 16, 16>}, {pipeline_mode = #tpu.pipeline_mode<synchronous>, transform_indices = @transform_4, window_bounds = array<i64: 16, 1>}, {transform_indices = @transform_5, window_bounds = array<i64: 1, 16, 256>}]} {
    %c0 = arith.constant 0 : index
    %c0_0 = arith.constant 0 : index
    %c0_1 = arith.constant 0 : index
    %0 = vector.load %arg2[%c0, %c0_0, %c0_1] : memref<1x16x256xf32, #tpu.memory_space<vmem>>, vector<1x16x256xf32>
    %1 = vector.shape_cast %0 : vector<1x16x256xf32> to vector<16x256xf32>
    %c0_2 = arith.constant 0 : index
    %c0_3 = arith.constant 0 : index
    %2 = vector.load %arg3[%c0_2, %c0_3] : memref<16x16xbf16, #tpu.memory_space<vmem>>, vector<16x16xbf16>
    %3 = arith.truncf %1 : vector<16x256xf32> to vector<16x256xbf16>
    %cst = arith.constant dense<0.000000e+00> : vector<16x256xf32>
    %4 = tpu.matmul %2, %3, %cst {dimension_numbers = #tpu.dot_dimension_numbers<[1], [0], [0], [1], [0, 0, 1, 1], [], []>} : vector<16x16xbf16>, vector<16x256xbf16>, vector<16x256xf32> -> vector<16x256xf32>
    %c0_4 = arith.constant 0 : index
    %c0_5 = arith.constant 0 : index
    %5 = vector.load %arg4[%c0_4, %c0_5] : memref<16x1xf32, #tpu.memory_space<vmem>>, vector<16x1xf32>
    %6 = vector.broadcast %5 : vector<16x1xf32> to vector<16x256xf32>
    %7 = arith.addf %4, %6 : vector<16x256xf32>
    %cst_6 = arith.constant 0.000000e+00 : f32
    %8 = vector.broadcast %cst_6 : f32 to vector<16x256xf32>
    %9 = arith.maximumf %7, %8 : vector<16x256xf32>
    %c0_7 = arith.constant 0 : index
    %c0_8 = arith.constant 0 : index
    %10 = vector.load %arg5[%c0_7, %c0_8] : memref<16x16xbf16, #tpu.memory_space<vmem>>, vector<16x16xbf16>
    %11 = arith.truncf %9 : vector<16x256xf32> to vector<16x256xbf16>
    %cst_9 = arith.constant dense<0.000000e+00> : vector<16x256xf32>
    %12 = tpu.matmul %10, %11, %cst_9 {dimension_numbers = #tpu.dot_dimension_numbers<[1], [0], [0], [1], [0, 0, 1, 1], [], []>} : vector<16x16xbf16>, vector<16x256xbf16>, vector<16x256xf32> -> vector<16x256xf32>
    %c0_10 = arith.constant 0 : index
    %c0_11 = arith.constant 0 : index
    %13 = vector.load %arg6[%c0_10, %c0_11] : memref<16x1xf32, #tpu.memory_space<vmem>>, vector<16x1xf32>
    %14 = vector.broadcast %13 : vector<16x1xf32> to vector<16x256xf32>
    %15 = arith.addf %12, %14 : vector<16x256xf32>
    %16 = arith.addf %15, %1 : vector<16x256xf32>
    %cst_12 = arith.constant 0.000000e+00 : f32
    %17 = vector.broadcast %cst_12 : f32 to vector<16x256xf32>
    %18 = arith.maximumf %16, %17 : vector<16x256xf32>
    %c0_13 = arith.constant 0 : index
    %c0_14 = arith.constant 0 : index
    %c0_15 = arith.constant 0 : index
    %19 = vector.load %arg7[%c0_13, %c0_14, %c0_15] : memref<1x16x256xf32, #tpu.memory_space<vmem>>, vector<1x16x256xf32>
    %20 = vector.shape_cast %19 : vector<1x16x256xf32> to vector<16x256xf32>
    %21 = vector.shape_cast %18 : vector<16x256xf32> to vector<1x16x256xf32>
    tpu.vector_store %arg7[%c0_13, %c0_14, %c0_15], %21 {strides = array<i32>} : memref<1x16x256xf32, #tpu.memory_space<vmem>>, vector<1x16x256xf32>,
    return
  }
  func.func @transform_0(%arg0: i32, %arg1: i32) -> (i32, i32, i32) {
    %c0_i32 = arith.constant 0 : i32
    %c0_i32_0 = arith.constant 0 : i32
    return %arg0, %c0_i32, %arg1 : i32, i32, i32
  }
  func.func @transform_1(%arg0: i32, %arg1: i32) -> (i32, i32) {
    %c0_i32 = arith.constant 0 : i32
    %c0_i32_0 = arith.constant 0 : i32
    %c0_i32_1 = arith.constant 0 : i32
    return %c0_i32, %c0_i32_0 : i32, i32
  }
  func.func @transform_2(%arg0: i32, %arg1: i32) -> (i32, i32) {
    %c0_i32 = arith.constant 0 : i32
    %c0_i32_0 = arith.constant 0 : i32
    %c0_i32_1 = arith.constant 0 : i32
    return %c0_i32, %c0_i32_0 : i32, i32
  }
  func.func @transform_3(%arg0: i32, %arg1: i32) -> (i32, i32) {
    %c0_i32 = arith.constant 0 : i32
    %c0_i32_0 = arith.constant 0 : i32
    %c0_i32_1 = arith.constant 0 : i32
    return %c0_i32, %c0_i32_0 : i32, i32
  }
  func.func @transform_4(%arg0: i32, %arg1: i32) -> (i32, i32) {
    %c0_i32 = arith.constant 0 : i32
    %c0_i32_0 = arith.constant 0 : i32
    %c0_i32_1 = arith.constant 0 : i32
    return %c0_i32, %c0_i32_0 : i32, i32
  }
  func.func @transform_5(%arg0: i32, %arg1: i32) -> (i32, i32, i32) {
    %c0_i32 = arith.constant 0 : i32
    %c0_i32_0 = arith.constant 0 : i32
    return %arg0, %c0_i32, %arg1 : i32, i32, i32
  }
}

</mosaic_0001>

<llo_original>
// kernel: tpu_custom_call.1
$region0: #{tpu_custom_call.1}
  #allocation0 [shape = 'u32[]', space=smem, size = 0x4, offset = 0x4, fixed_abs, tag = 'smem constant byte address 0x4 - core index']
  #allocation1 [shape = 'u32[144,128]{1,0:T(1,128)}', space=vmem, size = 0x12000, scoped, tag = 'internal scratch']
  %s0 = inlined_call_operand.hbm [shape: f32[2,16,200], index: 0, kind: input, shape index: {}]
  %s1 = inlined_call_operand.vmem [shape: bf16[16,16], index: 1, kind: input, shape index: {}]
  %s2 = inlined_call_operand.vmem [shape: f32[16,1], index: 2, kind: input, shape index: {}]
  %s3 = inlined_call_operand.vmem [shape: bf16[16,16], index: 3, kind: input, shape index: {}]
  %s4 = inlined_call_operand.vmem [shape: f32[16,1], index: 4, kind: input, shape index: {}]
  %s5 = inlined_call_operand.hbm [shape: f32[2,16,200], index: 5, kind: output, shape index: {}]
  %s6 = sld [smem:[#allocation0]]
  $region57: #{tpu_custom_call.1} parent=0
    _
  %s8 = ssub.s32 1, %s6
  %s9 = scalar_select 0, %s8, %s6
  $region1: #{tpu_custom_call.1} parent=0
    #allocation2 [shape = 'u8[32768]{0}', space=vmem, size = 0x8000, scoped, tag = 'input window, operand 0']
    #allocation3 [shape = 's32[2]{0}', space=sflag, size = 0x8, scoped, tag = 'scoped memory for tpu_custom_call.1']
    #allocation4 [shape = 's32[2]{0}', space=sflag, size = 0x8, scoped, tag = 'scoped memory for tpu_custom_call.1']
    #allocation5 [shape = 'u8[32768]{0}', space=vmem, size = 0x8000, scoped, tag = 'output window, operand 0']
    %10 = vsyncpa [#allocation3], 0
    %s11 = scalar_lea.sflag [#allocation3], 1
    %12 = vsyncpa %s11, 0
    %13 = vsyncpa [#allocation4], 0
    %s14 = scalar_lea.sflag [#allocation4], 1
    %15 = vsyncpa %s14, 0
    loop: start=0, step=1, limit=4
    $region2: #{tpu_custom_call.1} parent=1 // loop_pre_header
      _
    $region3: #{tpu_custom_call.1} parent=1 // loop_header
      %s17 = sphi 0, %s21
      %p18 = scmp.ge.s32.totalorder %s17, 4
      %s24 = sphi 0, %s36
      %s25 = sphi 0, %s32
      %s26 = sphi 0, %s24
      %s27 = sphi 0, %s25
      %s28 = sphi 0, %s26
      %s29 = sphi 0, %s27
      %s41 = sphi 0, %s43
      %s44 = sphi 0, %s41
      %s45 = sphi 0, %s44
      %s61 = sphi 0, %s45
      %s65 = sphi 0, %s65
      %s67 = sphi 0, %s65
      %s68 = sphi 0, %s67
      %s82 = sphi 0, %s68
      %s86 = sphi 0, %s86
      %s88 = sphi 0, %s86
      %s89 = sphi 0, %s88
      %s103 = sphi 0, %s89
      %s107 = sphi 0, %s107
      %s109 = sphi 0, %s107
      %s110 = sphi 0, %s109
      %s124 = sphi 0, %s110
      %s128 = sphi 0, %s128
      %s130 = sphi 0, %s128
      %s131 = sphi 0, %s130
      %s145 = sphi 0, %s131
      %s153 = sphi 0, %s155
      %s156 = sphi 0, %s153
      %s157 = sphi 0, %s156
      %s173 = sphi 0, %s157
    $region4: #{tpu_custom_call.1} parent=1 // loop_header_branch
      %20 = sbr.rel (%p18) target = $region8
    $region5: #{tpu_custom_call.1} parent=1 // loop_body
      %s22 = ssub.s32 %s17, 1
      %s23 = ssub.s32 %s17, 2
      %s30 = sadd.s32 1, %s25
      %p31 = scmp.ge.s32.totalorder %s30, 1
      %s32 = scalar_select %p31, 0, %s30
      %s33 = sadd.s32 1, %s24
      %s34 = scalar_select %p31, %s33, %s24
      %p35 = scmp.ge.s32.totalorder %s34, 2
      %s36 = scalar_select %p35, 0, %s34
      %s37 = ssub.s32 %s24, %s36
      %s38 = ssub.s32 %s25, %s32
      %s39 = sor.u32 %s37, %s38
      %p40 = scmp.eq.s32.totalorder %s39, 0
      %s42 = sadd.s32 %s41, 1
      %s43 = scalar_select %p40, %s41, %s42
      %p46 = pneg %p40
      %p47 = scmp.eq.s32.totalorder %s17, 1
      %p48 = por %p46, %p47
      %p49 = scmp.ne.s32.totalorder %s41, %s44
      %p50 = scmp.eq.s32.totalorder %s17, 0
      %p51 = por %p49, %p50
      %p52 = scmp.ne.s32.totalorder %s41, %s44
      %p53 = scmp.eq.s32.totalorder %s22, 1
      %p54 = por %p52, %p53
      %p55 = scmp.ne.s32.totalorder %s44, %s45
      %p56 = scmp.eq.s32.totalorder %s22, 0
      %p57 = por %p55, %p56
      %p58 = scmp.ne.s32.totalorder %s44, %s45
      %p59 = scmp.eq.s32.totalorder %s23, 1
      %p60 = por %p58, %p59
      %p62 = scmp.ne.s32.totalorder %s45, %s61
      %p63 = scmp.eq.s32.totalorder %s23, 0
      %p64 = por %p62, %p63
      %s66 = sadd.s32 %s65, 1
      %p69 = scmp.eq.s32.totalorder %s17, 1
      %p70 = scmp.ne.s32.totalorder %s65, %s67
      %p71 = scmp.eq.s32.totalorder %s17, 0
      %p72 = por %p70, %p71
      %p73 = scmp.ne.s32.totalorder %s65, %s67
      %p74 = scmp.eq.s32.totalorder %s22, 1
      %p75 = por %p73, %p74
      %p76 = scmp.ne.s32.totalorder %s67, %s68
      %p77 = scmp.eq.s32.totalorder %s22, 0
      %p78 = por %p76, %p77
      %p79 = scmp.ne.s32.totalorder %s67, %s68
      %p80 = scmp.eq.s32.totalorder %s23, 1
      %p81 = por %p79, %p80
      %p83 = scmp.ne.s32.totalorder %s68, %s82
      %p84 = scmp.eq.s32.totalorder %s23, 0
      %p85 = por %p83, %p84
      %s87 = sadd.s32 %s86, 1
      %p90 = scmp.eq.s32.totalorder %s17, 1
      %p91 = scmp.ne.s32.totalorder %s86, %s88
      %p92 = scmp.eq.s32.totalorder %s17, 0
      %p93 = por %p91, %p92
      %p94 = scmp.ne.s32.totalorder %s86, %s88
      %p95 = scmp.eq.s32.totalorder %s22, 1
      %p96 = por %p94, %p95
      %p97 = scmp.ne.s32.totalorder %s88, %s89
      %p98 = scmp.eq.s32.totalorder %s22, 0
      %p99 = por %p97, %p98
      %p100 = scmp.ne.s32.totalorder %s88, %s89
      %p101 = scmp.eq.s32.totalorder %s23, 1
      %p102 = por %p100, %p101
      %p104 = scmp.ne.s32.totalorder %s89, %s103
      %p105 = scmp.eq.s32.totalorder %s23, 0
      %p106 = por %p104, %p105
      %s108 = sadd.s32 %s107, 1
      %p111 = scmp.eq.s32.totalorder %s17, 1
      %p112 = scmp.ne.s32.totalorder %s107, %s109
      %p113 = scmp.eq.s32.totalorder %s17, 0
      %p114 = por %p112, %p113
      %p115 = scmp.ne.s32.totalorder %s107, %s109
      %p116 = scmp.eq.s32.totalorder %s22, 1
      %p117 = por %p115, %p116
      %p118 = scmp.ne.s32.totalorder %s109, %s110
      %p119 = scmp.eq.s32.totalorder %s22, 0
      %p120 = por %p118, %p119
      %p121 = scmp.ne.s32.totalorder %s109, %s110
      %p122 = scmp.eq.s32.totalorder %s23, 1
      %p123 = por %p121, %p122
      %p125 = scmp.ne.s32.totalorder %s110, %s124
      %p126 = scmp.eq.s32.totalorder %s23, 0
      %p127 = por %p125, %p126
      %s129 = sadd.s32 %s128, 1
      %p132 = scmp.eq.s32.totalorder %s17, 1
      %p133 = scmp.ne.s32.totalorder %s128, %s130
      %p134 = scmp.eq.s32.totalorder %s17, 0
      %p135 = por %p133, %p134
      %p136 = scmp.ne.s32.totalorder %s128, %s130
      %p137 = scmp.eq.s32.totalorder %s22, 1
      %p138 = por %p136, %p137
      %p139 = scmp.ne.s32.totalorder %s130, %s131
      %p140 = scmp.eq.s32.totalorder %s22, 0
      %p141 = por %p139, %p140
      %p142 = scmp.ne.s32.totalorder %s130, %s131
      %p143 = scmp.eq.s32.totalorder %s23, 1
      %p144 = por %p142, %p143
      %p146 = scmp.ne.s32.totalorder %s131, %s145
      %p147 = scmp.eq.s32.totalorder %s23, 0
      %p148 = por %p146, %p147
      %s149 = ssub.s32 %s24, %s36
      %s150 = ssub.s32 %s25, %s32
      %s151 = sor.u32 %s149, %s150
      %p152 = scmp.eq.s32.totalorder %s151, 0
      %s154 = sadd.s32 %s153, 1
      %s155 = scalar_select %p152, %s153, %s154
      %p158 = pneg %p152
      %p159 = scmp.eq.s32.totalorder %s17, 1
      %p160 = por %p158, %p159
      %p161 = scmp.ne.s32.totalorder %s153, %s156
      %p162 = scmp.eq.s32.totalorder %s17, 0
      %p163 = por %p161, %p162
      %p164 = scmp.ne.s32.totalorder %s153, %s156
      %p165 = scmp.eq.s32.totalorder %s22, 1
      %p166 = por %p164, %p165
      %p167 = scmp.ne.s32.totalorder %s156, %s157
      %p168 = scmp.eq.s32.totalorder %s22, 0
      %p169 = por %p167, %p168
      %p170 = scmp.ne.s32.totalorder %s156, %s157
      %p171 = scmp.eq.s32.totalorder %s23, 1
      %p172 = por %p170, %p171
      %p174 = scmp.ne.s32.totalorder %s157, %s173
      %p175 = scmp.eq.s32.totalorder %s23, 0
      %p176 = por %p174, %p175
      %p177 = scmp.le.s32.totalorder 1, %s17
      %p178 = scmp.lt.s32.totalorder %s17, 3
      %p179 = pnand %p177, %p178
      %p180 = pneg %p179
      // Predicated region
      $region9: #{tpu_custom_call.1} parent=5 // pred_check
        _
      $region10: #{tpu_custom_call.1} parent=5 // pred_check_branch
        %182 = sbr.rel (%p179) target = $region12
      $region11: #{tpu_custom_call.1} parent=5 // pred_region
        %s183 = ssub.s32 %s17, 1
        // Predicated region
        $region13: #{tpu_custom_call.1} parent=11 // pred_check
          %p184 = pneg %p78
        $region14: #{tpu_custom_call.1} parent=11 // pred_check_branch
          %186 = sbr.rel (%p184) target = $region16
        $region15: #{tpu_custom_call.1} parent=11 // pred_region
          _
        $region16: #{tpu_custom_call.1} parent=11 // pred_fallthru
          _
        // Predicated region
        $region17: #{tpu_custom_call.1} parent=11 // pred_check
          %p187 = pneg %p99
        $region18: #{tpu_custom_call.1} parent=11 // pred_check_branch
          %189 = sbr.rel (%p187) target = $region20
        $region19: #{tpu_custom_call.1} parent=11 // pred_region
          _
        $region20: #{tpu_custom_call.1} parent=11 // pred_fallthru
          _
        // Predicated region
        $region21: #{tpu_custom_call.1} parent=11 // pred_check
          %p190 = pneg %p120
        $region22: #{tpu_custom_call.1} parent=11 // pred_check_branch
          %192 = sbr.rel (%p190) target = $region24
        $region23: #{tpu_custom_call.1} parent=11 // pred_region
          _
        $region24: #{tpu_custom_call.1} parent=11 // pred_fallthru
          _
        // Predicated region
        $region25: #{tpu_custom_call.1} parent=11 // pred_check
          %p193 = pneg %p141
        $region26: #{tpu_custom_call.1} parent=11 // pred_check_branch
          %195 = sbr.rel (%p193) target = $region28
        $region27: #{tpu_custom_call.1} parent=11 // pred_region
          _
        $region28: #{tpu_custom_call.1} parent=11 // pred_fallthru
          _
      $region12: #{tpu_custom_call.1} parent=5 // pred_fallthru
        _
      %p196 = scmp.lt.s32.totalorder %s17, 2
      // Predicated region
      $region29: #{tpu_custom_call.1} parent=5 // pred_check
        %p197 = pneg %p196
      $region30: #{tpu_custom_call.1} parent=5 // pred_check_branch
        %199 = sbr.rel (%p197) target = $region32
      $region31: #{tpu_custom_call.1} parent=5 // pred_region
        // Predicated region
        $region33: #{tpu_custom_call.1} parent=31 // pred_check
          %p200 = pneg %p51
        $region34: #{tpu_custom_call.1} parent=31 // pred_check_branch
          %202 = sbr.rel (%p200) target = $region36
        $region35: #{tpu_custom_call.1} parent=31 // pred_region
          %s203 = sand.u32 %s41, 1
          %s204 = scalar_lea.sflag [#allocation3], %s203
          %s205 = sand.u32 %s41, 1
          %s206 = smul.addr %s205, 32
          %s207 = scalar_lea.vmem [#allocation2], %s206
          %s208 = smul.u32 2, %s25
          %s210 = ssub.s32 512, 512
          %211 = vsyncadd %s204, %s210
          %s212 = smul.addr %s24, 4
          %s213 = sadd.s32 %s208, %s212
          %s214 = smul.addr %s213, 128
          %s215 = scalar_lea.hbm %s0, %s214
          %s216 = sshll.u32 %s207, 4
          %s217 = int_to_ptr.vmem [resolvable:$true] %s216
          %222 = dma.hbm_to_vmem [thread:$0]  %s215, 512, %s217, %s204, 256, 256, 16
        $region36: #{tpu_custom_call.1} parent=31 // pred_fallthru
          _
      $region32: #{tpu_custom_call.1} parent=5 // pred_fallthru
        _
      %p223 = scmp.le.s32.totalorder 1, %s17
      %p224 = scmp.lt.s32.totalorder %s17, 3
      %p225 = pnand %p223, %p224
      %p226 = pneg %p225
      // Predicated region
      $region37: #{tpu_custom_call.1} parent=5 // pred_check
        _
      $region38: #{tpu_custom_call.1} parent=5 // pred_check_branch
        %228 = sbr.rel (%p225) target = $region40
      $region39: #{tpu_custom_call.1} parent=5 // pred_region
        %s229 = ssub.s32 %s17, 1
        %s230 = sand.u32 %s44, 1
        %s231 = scalar_lea.sflag [#allocation3], %s230
        %s232 = sand.u32 %s44, 1
        %s233 = smul.addr %s232, 32
        %s234 = scalar_lea.vmem [#allocation2], %s233
        // Predicated region
        $region41: #{tpu_custom_call.1} parent=39 // pred_check
          %p235 = pneg %p57
        $region42: #{tpu_custom_call.1} parent=39 // pred_check_branch
          %237 = sbr.rel (%p235) target = $region44
        $region43: #{tpu_custom_call.1} parent=39 // pred_region
          %238 = dma.done %s231, 512
        $region44: #{tpu_custom_call.1} parent=39 // pred_fallthru
          _
        %s239 = sand.u32 %s44, 1
        %s240 = scalar_lea.sflag [#allocation3], %s239
        %s241 = sand.u32 %s44, 1
        %s242 = smul.addr %s241, 32
        %s243 = scalar_lea.vmem [#allocation2], %s242
        %p244 = pneg %p57
        %p245 = pneg %p54
        %p246 = pneg %p78
        %p247 = pneg %p75
        %p248 = pneg %p99
        %p249 = pneg %p96
        %p250 = pneg %p120
        %p251 = pneg %p117
        %p252 = pneg %p141
        %p253 = pneg %p138
        %p254 = pneg %p169
        %p255 = pneg %p166
        %s256 = sand.u32 %s156, 1
        %s257 = scalar_lea.sflag [#allocation4], %s256
        %s258 = sand.u32 %s156, 1
        %s259 = smul.addr %s258, 32
        %s260 = scalar_lea.vmem [#allocation5], %s259
        %s261 = smul.u32 2, %s27
        %s262 = smul.u32 2, %s27
        %v264 = vld [vmem:[%s234] sm:$0xff]
        %v265 = vld [vmem:[%s234 + $0x8] sm:$0xff]
        %v266 = vld [vmem:[%s234 + $0x10] sm:$0xff]
        %v267 = vld [vmem:[%s234 + $0x18] sm:$0xff]
        %v268 = vld [vmem:[%s1] sm:$0xf]
        %v269 = vld [vmem:[%s1 + $0x4] sm:$0xf]
        %v270 = vpack.c.bf16 %v266, %v264
        %v271 = vpack.c.bf16 %v267, %v265
        %v272 = vld [vmem:[%s2] sm:$0xff]
        %v273 = vld [vmem:[%s2 + $0x8] sm:$0xff]
        %275 = vset.pattern.permute.xlu0 0
        %276 = vperm.xlu0 %275, %v272
        %v277 = vpop.permute.xlu0 %276
        %280 = vset.pattern.permute.xlu0 0
        %281 = vperm.xlu0 %280, %v273
        %v282 = vpop.permute.xlu0 %281
        %v286 = vunpack.c.l.b16 %v268
        %v287 = vunpack.c.l.b16 %v269
        %v288 = vpack.c.b16 %v287, %v286
        %vm289 = vcmask 130048
        %v291 = vsel %vm289, %v288, 0
        %293 = vmatprep.subr.bf16.mxu0 %v271
        %294 = vmatpush1.bf16.msra.mxu0 %v270
        %295 = vmatprep.subr.bf16.mxu0 0
        %296 = vmatpush1.bf16.msra.mxu0 0
        %297 = vmatprep.subr.bf16.mxu0 0
        %298 = vmatpush1.bf16.msra.mxu0 0
        %299 = vmatprep.subr.bf16.mxu0 0
        %300 = vmatpush1.bf16.msra.mxu0 0
        %301 = vmatprep.subr.bf16.mxu0 0
        %302 = vmatpush1.bf16.msra.mxu0 0
        %303 = vmatprep.subr.bf16.mxu0 0
        %304 = vmatpush1.bf16.msra.mxu0 0
        %305 = vmatprep.subr.bf16.mxu0 0
        %306 = vmatpush1.bf16.msra.mxu0 0
        %307 = vmatprep.subr.bf16.mxu0 0
        %308 = vmatpush1.bf16.msra.mxu0 0
        %309 = vmatprep.subr.bf16.mxu0 0
        %310 = vmatpush1.bf16.msra.mxu0 0
        %311 = vmatprep.subr.bf16.mxu0 0
        %312 = vmatpush1.bf16.msra.mxu0 0
        %313 = vmatprep.subr.bf16.mxu0 0
        %314 = vmatpush1.bf16.msra.mxu0 0
        %315 = vmatprep.subr.bf16.mxu0 0
        %316 = vmatpush1.bf16.msra.mxu0 0
        %317 = vmatprep.subr.bf16.mxu0 0
        %318 = vmatpush1.bf16.msra.mxu0 0
        %319 = vmatprep.subr.bf16.mxu0 0
        %320 = vmatpush1.bf16.msra.mxu0 0
        %321 = vmatprep.subr.bf16.mxu0 0
        %322 = vmatpush1.bf16.msra.mxu0 0
        %323 = vmatprep.subr.bf16.mxu0 0
        %324 = vmatpush1.bf16.msra.mxu0 0
        %325 = vmatprep.mubr.bf16.mxu0 0
        %326 = vmatmul.mubr.bf16.gmra.mrb[0].mxu0 %v291
        %v327 = vpop.f32.mrb[0].mxu0
        %v328 = vadd.f32 %v277, %v327
        %v329 = vpop.f32.mrb[0].mxu0
        %v330 = vadd.f32 %v277, %v329
        %v331 = vpop.f32.mrb[0].mxu0
        %v332 = vadd.f32 %v282, %v331
        %v333 = vpop.f32.mrb[0].mxu0
        %v334 = vadd.f32 %v282, %v333
        %335 = vdwg.mxu0
        %v336 = vmax.f32 %v328, 0.0
        %v337 = vmax.f32 %v330, 0.0
        %v338 = vmax.f32 %v332, 0.0
        %v339 = vmax.f32 %v334, 0.0
        %v340 = vld [vmem:[%s3] sm:$0xf]
        %v341 = vld [vmem:[%s3 + $0x4] sm:$0xf]
        %v342 = vpack.c.bf16 %v338, %v336
        %v343 = vpack.c.bf16 %v339, %v337
        %v344 = vld [vmem:[%s4] sm:$0xff]
        %v345 = vld [vmem:[%s4 + $0x8] sm:$0xff]
        %347 = vset.pattern.permute.xlu0 0
        %348 = vperm.xlu0 %347, %v344
        %v349 = vpop.permute.xlu0 %348
        %352 = vset.pattern.permute.xlu0 0
        %353 = vperm.xlu0 %352, %v345
        %v354 = vpop.permute.xlu0 %353
        %v358 = vunpack.c.l.b16 %v340
        %v359 = vunpack.c.l.b16 %v341
        %v360 = vpack.c.b16 %v359, %v358
        %v362 = vsel %vm289, %v360, 0
        %364 = vmatprep.subr.bf16.mxu0 %v343
        %365 = vmatpush1.bf16.msra.mxu0 %v342
        %366 = vmatprep.subr.bf16.mxu0 0
        %367 = vmatpush1.bf16.msra.mxu0 0
        %368 = vmatprep.subr.bf16.mxu0 0
        %369 = vmatpush1.bf16.msra.mxu0 0
        %370 = vmatprep.subr.bf16.mxu0 0
        %371 = vmatpush1.bf16.msra.mxu0 0
        %372 = vmatprep.subr.bf16.mxu0 0
        %373 = vmatpush1.bf16.msra.mxu0 0
        %374 = vmatprep.subr.bf16.mxu0 0
        %375 = vmatpush1.bf16.msra.mxu0 0
        %376 = vmatprep.subr.bf16.mxu0 0
        %377 = vmatpush1.bf16.msra.mxu0 0
        %378 = vmatprep.subr.bf16.mxu0 0
        %379 = vmatpush1.bf16.msra.mxu0 0
        %380 = vmatprep.subr.bf16.mxu0 0
        %381 = vmatpush1.bf16.msra.mxu0 0
        %382 = vmatprep.subr.bf16.mxu0 0
        %383 = vmatpush1.bf16.msra.mxu0 0
        %384 = vmatprep.subr.bf16.mxu0 0
        %385 = vmatpush1.bf16.msra.mxu0 0
        %386 = vmatprep.subr.bf16.mxu0 0
        %387 = vmatpush1.bf16.msra.mxu0 0
        %388 = vmatprep.subr.bf16.mxu0 0
        %389 = vmatpush1.bf16.msra.mxu0 0
        %390 = vmatprep.subr.bf16.mxu0 0
        %391 = vmatpush1.bf16.msra.mxu0 0
        %392 = vmatprep.subr.bf16.mxu0 0
        %393 = vmatpush1.bf16.msra.mxu0 0
        %394 = vmatprep.subr.bf16.mxu0 0
        %395 = vmatpush1.bf16.msra.mxu0 0
        %396 = vmatprep.mubr.bf16.mxu0 0
        %397 = vmatmul.mubr.bf16.gmra.mrb[0].mxu0 %v362
        %v398 = vpop.f32.mrb[0].mxu0
        %v399 = vadd.f32 %v349, %v398
        %v400 = vpop.f32.mrb[0].mxu0
        %v401 = vadd.f32 %v349, %v400
        %v402 = vpop.f32.mrb[0].mxu0
        %v403 = vadd.f32 %v354, %v402
        %v404 = vpop.f32.mrb[0].mxu0
        %v405 = vadd.f32 %v354, %v404
        %406 = vdwg.mxu0
        %v407 = vadd.f32 %v399, %v264
        %v408 = vadd.f32 %v401, %v265
        %v409 = vadd.f32 %v403, %v266
        %v410 = vadd.f32 %v405, %v267
        %v411 = vmax.f32 %v407, 0.0
        %v412 = vmax.f32 %v408, 0.0
        %v413 = vmax.f32 %v409, 0.0
        %v414 = vmax.f32 %v410, 0.0
        %415 = vst [vmem:[%s260] sm:$0xff] %v411
        %416 = vst [vmem:[%s260 + $0x8] sm:$0xff] %v412
        %417 = vst [vmem:[%s260 + $0x10] sm:$0xff] %v413
        %418 = vst [vmem:[%s260 + $0x18] sm:$0xff] %v414
        %s419 = sand.u32 %s156, 1
        %s420 = scalar_lea.sflag [#allocation4], %s419
        %s421 = sand.u32 %s156, 1
        %s422 = smul.addr %s421, 32
        %s423 = scalar_lea.vmem [#allocation5], %s422
        // Predicated region
        $region45: #{tpu_custom_call.1} parent=39 // pred_check
          %p424 = pneg %p166
        $region46: #{tpu_custom_call.1} parent=39 // pred_check_branch
          %426 = sbr.rel (%p424) target = $region48
        $region47: #{tpu_custom_call.1} parent=39 // pred_region
          %s427 = smul.u32 2, %s27
          %s429 = ssub.s32 512, 512
          %430 = vsyncadd %s420, %s429
          %s431 = smul.addr %s26, 4
          %s432 = sadd.s32 %s427, %s431
          %s433 = smul.addr %s432, 128
          %s434 = scalar_lea.hbm %s5, %s433
          %s435 = sshll.u32 %s423, 4
          %s436 = int_to_ptr.vmem [resolvable:$true] %s435
          %441 = dma.vmem_to_hbm [thread:$0]  %s436, 512, %s434, %s420, 256, 256, 16
        $region48: #{tpu_custom_call.1} parent=39 // pred_fallthru
          _
      $region40: #{tpu_custom_call.1} parent=5 // pred_fallthru
        _
      %p442 = scmp.le.s32.totalorder 2, %s17
      // Predicated region
      $region49: #{tpu_custom_call.1} parent=5 // pred_check
        %p443 = pneg %p442
      $region50: #{tpu_custom_call.1} parent=5 // pred_check_branch
        %445 = sbr.rel (%p443) target = $region52
      $region51: #{tpu_custom_call.1} parent=5 // pred_region
        %s446 = ssub.s32 %s17, 2
        // Predicated region
        $region53: #{tpu_custom_call.1} parent=51 // pred_check
          %p447 = pneg %p172
        $region54: #{tpu_custom_call.1} parent=51 // pred_check_branch
          %449 = sbr.rel (%p447) target = $region56
        $region55: #{tpu_custom_call.1} parent=51 // pred_region
          %s450 = sand.u32 %s157, 1
          %s451 = scalar_lea.sflag [#allocation4], %s450
          %s452 = sand.u32 %s157, 1
          %s453 = smul.addr %s452, 32
          %s454 = scalar_lea.vmem [#allocation5], %s453
          %455 = dma.done %s451, 512
        $region56: #{tpu_custom_call.1} parent=51 // pred_fallthru
          _
      $region52: #{tpu_custom_call.1} parent=5 // pred_fallthru
        _
    $region6: #{tpu_custom_call.1} parent=1 // loop_footer
      %s21 = sadd.s32 1, %s17
    $region7: #{tpu_custom_call.1} parent=1 // loop_footer_branch
      %16 = sbr.rel target = $region3
    $region8: #{tpu_custom_call.1} parent=1 // loop_exit
      _
    %456 = vsyncpa [#allocation3], 1
    %s457 = scalar_lea.sflag [#allocation3], 1
    %458 = vsyncpa %s457, 1
    %459 = vsyncpa [#allocation4], 1
    %s460 = scalar_lea.sflag [#allocation4], 1
    %461 = vsyncpa %s460, 1

</llo_original>
